<compile_context>
chip_gen: v6e
topology: v6e:2x2x1
jax: 0.10.0
libtpu: 0.0.40
codegen_flags: <defaults>
</compile_context>

<pallas_src>
import numpy as np
import jax
import jax.numpy as jnp
from jax.experimental import pallas as pl
from jax.experimental.pallas import tpu as pltpu

# --- module hyperparameters (match cnn.__init__ defaults) ---
L_IN = 16
K1, K2 = 3, 2 * 3
PAD1, PAD2 = K1 // 2, K2 // 2
C1, C2 = 5, 7
POOL = 2
HID = 50

L_OUT1 = L_IN + 2 * PAD1 - K1 + 1          # 16
L1 = L_OUT1 // POOL                        # 8   (pooled conv1 length)
L_OUT2 = L1 + 2 * PAD2 - K2 + 1            # 9
L2 = L_OUT2 // POOL                        # 4   (pooled conv2 length)
NR_FEATURES = C2 * L2                      # 28

HALF = 64                                  # even/odd halves of the merged conv slabs
HID_PAD = 64                               # MLP hidden lanes, zero-padded from 50
OUT_LANES = 8                              # final output lanes (column 0 is the result)


def _round_up(n, m):
    return ((n + m - 1) // m) * m


def _cdiv(a, b):
    return -(-a // b)


# ---------------- fused Pallas kernel ----------------
def fused_cnn_kernel(x_ref, w1c_ref, b1_ref, w2c_ref, b2_ref,
                     lw1_ref, lb1_ref, lw2_ref, lb2_ref, lwo_ref, lbo_ref, o_ref):
    x = x_ref[...]                                                     # (TB, L_IN)

    # conv1 + relu + maxpool(2): one merged Toeplitz matmul; even output positions live
    # in lanes [0:HALF), odd in [HALF:2*HALF); pooling = max of the two lane halves and
    # relu(max(even,odd) + bias) is valid because ReLU is monotone and the bias is
    # shared across the pooled pair (zero-padding folded into the slab).
    h = jnp.dot(x, w1c_ref[...], preferred_element_type=jnp.float32)   # (TB, 128)
    p1 = jnp.maximum(jnp.maximum(h[:, :HALF], h[:, HALF:]) + b1_ref[...], 0.0)  # (TB, 64)

    # conv2 + relu + maxpool(2): same trick on the pooled conv1 activations.
    h2 = jnp.dot(p1.astype(w2c_ref.dtype), w2c_ref[...],
                 preferred_element_type=jnp.float32)                   # (TB, 128)
    feats = jnp.maximum(jnp.maximum(h2[:, :HALF], h2[:, HALF:]) + b2_ref[...], 0.0)

    # MLP head (hidden padded to 64 lanes, final layer padded to 8 lanes).
    a1 = jnp.maximum(jnp.dot(feats.astype(lw1_ref.dtype), lw1_ref[...],
                             preferred_element_type=jnp.float32) + lb1_ref[...], 0.0)
    a2 = jnp.maximum(jnp.dot(a1.astype(lw2_ref.dtype), lw2_ref[...],
                             preferred_element_type=jnp.float32) + lb2_ref[...], 0.0)
    o_ref[...] = jnp.dot(a2.astype(lwo_ref.dtype), lwo_ref[...],
                         preferred_element_type=jnp.float32) + lbo_ref[...]


# ---------------- one-time parameter relayout (hoisted out of the forward) ----------------
def prepare_params(params, compute_dtype=jnp.float32):
    """Relayout PyTorch-convention params into kernel-ready slabs. Run once at init.

    compute_dtype: dtype for the matmul operands (use jnp.bfloat16 on v6e/v7x);
    biases and all elementwise math stay float32.
    """
    w1, b1, w2, b2, lw1, lb1, lw2, lb2, lwo, lbo = [np.asarray(p, np.float32) for p in params]

    # conv1 -> single Toeplitz matmul over the raw input; even outputs at lanes
    # [0:C1*L1), odd outputs at lanes [HALF : HALF+C1*L1); padding folded in.
    W1C = np.zeros((L_IN, 2 * HALF), np.float32)
    for parity in (0, 1):
        off = parity * HALF
        for c in range(C1):
            for j in range(L1):
                l = POOL * j + parity
                for k in range(K1):
                    q = l + k - PAD1
                    if 0 <= q < L_IN:
                        W1C[q, off + c * L1 + j] = w1[c, 0, k]

    # conv2 -> single Toeplitz matmul over pooled conv1 activations
    # (input lane layout: cin*L1 + pos, rows >= C1*L1 are zero).
    W2C = np.zeros((HALF, 2 * HALF), np.float32)
    for parity in (0, 1):
        off = parity * HALF
        for co in range(C2):
            for cin in range(C1):
                for j in range(L2):
                    l = POOL * j + parity
                    for k in range(K2):
                        q = l + k - PAD2
                        if 0 <= q < L1:
                            W2C[cin * L1 + q, off + co * L2 + j] = w2[co, cin, k]

    b1row = np.zeros((1, HALF), np.float32)
    b1row[0, :C1 * L1] = np.repeat(b1, L1)
    b2row = np.zeros((1, HALF), np.float32)
    b2row[0, :C2 * L2] = np.repeat(b2, L2)

    LW1P = np.zeros((HALF, HID_PAD), np.float32)
    LW1P[:NR_FEATURES, :HID] = lw1.T
    lb1p = np.zeros((1, HID_PAD), np.float32)
    lb1p[0, :HID] = lb1
    LW2P = np.zeros((HID_PAD, HID_PAD), np.float32)
    LW2P[:HID, :HID] = lw2.T
    lb2p = np.zeros((1, HID_PAD), np.float32)
    lb2p[0, :HID] = lb2
    LWOP = np.zeros((HID_PAD, OUT_LANES), np.float32)
    LWOP[:HID, 0] = lwo[0]
    lbop = np.zeros((1, OUT_LANES), np.float32)
    lbop[0, 0] = lbo[0]

    return (
        jnp.asarray(W1C, compute_dtype), jnp.asarray(b1row),
        jnp.asarray(W2C, compute_dtype), jnp.asarray(b2row),
        jnp.asarray(LW1P, compute_dtype), jnp.asarray(lb1p),
        jnp.asarray(LW2P, compute_dtype), jnp.asarray(lb2p),
        jnp.asarray(LWOP, compute_dtype), jnp.asarray(lbop),
    )


# ---------------- wrapper ----------------
def cnn_forward(x, prepared, *, block_b=1024):
    """x: (B, 1, L_IN) float32; prepared: output of prepare_params(params)."""
    B = x.shape[0]
    x2 = x.reshape(B, L_IN).astype(prepared[0].dtype)

    # Balanced batch tiling: minimize padding (<= 7 rows), keep TB a multiple of 8,
    # and keep >= 2 grid steps for large B so v7x's 2 TensorCores both get work.
    n_steps = _cdiv(B, block_b)
    if B >= 256:
        n_steps = max(n_steps, 2)
    TB = _round_up(_cdiv(B, n_steps), 8)
    grid = _cdiv(B, TB)
    B_pad = grid * TB
    if B_pad != B:
        x2 = jnp.pad(x2, ((0, B_pad - B), (0, 0)))

    def resident(a):                        # full-array, grid-invariant -> stays in VMEM
        return pl.BlockSpec(a.shape, lambda i: (0, 0))

    flops = 2 * B_pad * (L_IN * 2 * HALF + HALF * 2 * HALF
                         + HID_PAD * HID_PAD * 2 + HID_PAD * OUT_LANES)
    bytes_w = sum(int(np.prod(p.shape)) * p.dtype.itemsize for p in prepared)
    bytes_accessed = B_pad * (L_IN * x2.dtype.itemsize + OUT_LANES * 4) + bytes_w

    out = pl.pallas_call(
        fused_cnn_kernel,
        out_shape=jax.ShapeDtypeStruct((B_pad, OUT_LANES), jnp.float32),
        grid=(grid,),
        in_specs=[pl.BlockSpec((TB, L_IN), lambda i: (i, 0))]
                 + [resident(p) for p in prepared],
        out_specs=pl.BlockSpec((TB, OUT_LANES), lambda i: (i, 0)),
        compiler_params=pltpu.CompilerParams(dimension_semantics=("parallel",)),
        cost_estimate=pl.CostEstimate(flops=flops, transcendentals=0,
                                      bytes_accessed=bytes_accessed),
    )(x2, *prepared)
    return out[:B, :1]


# ---------------- deterministic parameter init (PyTorch-style uniform bounds) ----------------
def init_params(key):
    ks = jax.random.split(key, 10)

    def u(k, shape, fan_in):
        b = 1.0 / np.sqrt(fan_in)
        return jax.random.uniform(k, shape, jnp.float32, -b, b)

    w1 = u(ks[0], (C1, 1, K1), 1 * K1)
    b1 = u(ks[1], (C1,), 1 * K1)
    w2 = u(ks[2], (C2, C1, K2), C1 * K2)
    b2 = u(ks[3], (C2,), C1 * K2)
    lw1 = u(ks[4], (HID, NR_FEATURES), NR_FEATURES)
    lb1 = u(ks[5], (HID,), NR_FEATURES)
    lw2 = u(ks[6], (HID, HID), HID)
    lb2 = u(ks[7], (HID,), HID)
    lwo = u(ks[8], (1, HID), HID)
    lbo = u(ks[9], (1,), HID)
    return (w1, b1, w2, b2, lw1, lb1, lw2, lb2, lwo, lbo)


# ---------------- pure numpy reference (mirrors the PyTorch forward) ----------------
def ref_forward(x, w1, b1, w2, b2, lw1, lb1, lw2, lb2, lwo, lbo):
    B, _, L = x.shape
    xp = np.pad(x, ((0, 0), (0, 0), (PAD1, PAD1)))
    Lo1 = L + 2 * PAD1 - K1 + 1
    h1 = np.zeros((B, C1, Lo1), np.float32)
    for b in range(B):
        for c in range(C1):
            for l in range(Lo1):
                h1[b, c, l] = np.sum(xp[b, 0, l:l + K1] * w1[c, 0]) + b1[c]
    h1 = np.maximum(h1, 0)
    p1 = h1[:, :, :(Lo1 // POOL) * POOL].reshape(B, C1, Lo1 // POOL, POOL).max(-1)
    hp = np.pad(p1, ((0, 0), (0, 0), (PAD2, PAD2)))
    Lo2 = p1.shape[2] + 2 * PAD2 - K2 + 1
    h2 = np.zeros((B, C2, Lo2), np.float32)
    for b in range(B):
        for c in range(C2):
            for l in range(Lo2):
                h2[b, c, l] = np.sum(hp[b, :, l:l + K2] * w2[c]) + b2[c]
    h2 = np.maximum(h2, 0)
    p2 = h2[:, :, :(Lo2 // POOL) * POOL].reshape(B, C2, Lo2 // POOL, POOL).max(-1)
    f = p2.reshape(B, -1)
    a1 = np.maximum(f @ lw1.T + lb1, 0)
    a2 = np.maximum(a1 @ lw2.T + lb2, 0)
    return a2 @ lwo.T + lbo


if __name__ == "__main__":
    key = jax.random.PRNGKey(0)
    pkey, xkey, xkey2 = jax.random.split(key, 3)
    params = init_params(pkey)
    prepared = prepare_params(params)            # one-time relayout, not per forward
    np_params = [np.asarray(p) for p in params]

    # Small test: B=2, single grid step, 6 rows of batch padding.
    x = jax.random.normal(xkey, (2, 1, L_IN), jnp.float32)
    fwd = jax.jit(lambda xx: cnn_forward(xx, prepared))
    out = jax.block_until_ready(fwd(x))
    assert out.shape == (2, 1), out.shape
    np.testing.assert_allclose(np.asarray(out), ref_forward(np.asarray(x), *np_params),
                               rtol=1e-3, atol=1e-4)

    # Multi-step grid test: B=37 with a small tile to exercise pipelining + padding.
    xb = jax.random.normal(xkey2, (37, 1, L_IN), jnp.float32)
    fwd_small_tile = jax.jit(lambda xx: cnn_forward(xx, prepared, block_b=16))
    outb = jax.block_until_ready(fwd_small_tile(xb))
    assert outb.shape == (37, 1), outb.shape
    np.testing.assert_allclose(np.asarray(outb), ref_forward(np.asarray(xb), *np_params),
                               rtol=1e-3, atol=1e-4)

    print("KERNEL_OK")
</pallas_src>

<mosaic_0001>
module attributes {stable_mosaic.version = 11 : i64} {
  func.func @fused_cnn_kernel(%arg0: i32, %arg1: memref<8x16xf32, #tpu.memory_space<vmem>>, %arg2: memref<16x128xf32, #tpu.memory_space<vmem>>, %arg3: memref<1x64xf32, #tpu.memory_space<vmem>>, %arg4: memref<64x128xf32, #tpu.memory_space<vmem>>, %arg5: memref<1x64xf32, #tpu.memory_space<vmem>>, %arg6: memref<64x64xf32, #tpu.memory_space<vmem>>, %arg7: memref<1x64xf32, #tpu.memory_space<vmem>>, %arg8: memref<64x64xf32, #tpu.memory_space<vmem>>, %arg9: memref<1x64xf32, #tpu.memory_space<vmem>>, %arg10: memref<64x8xf32, #tpu.memory_space<vmem>>, %arg11: memref<1x8xf32, #tpu.memory_space<vmem>>, %arg12: memref<8x8xf32, #tpu.memory_space<vmem>>) attributes {dimension_semantics = [#tpu.dimension_semantics<parallel>], iteration_bounds = array<i64: 1>, scalar_prefetch = 0 : i64, scratch_operands = 0 : i64, tpu.core_type = #tpu.core_type<tc>, window_params = [{transform_indices = @transform_0, window_bounds = array<i64: 8, 16>}, {pipeline_mode = #tpu.pipeline_mode<synchronous>, transform_indices = @transform_1, window_bounds = array<i64: 16, 128>}, {pipeline_mode = #tpu.pipeline_mode<synchronous>, transform_indices = @transform_2, window_bounds = array<i64: 1, 64>}, {pipeline_mode = #tpu.pipeline_mode<synchronous>, transform_indices = @transform_3, window_bounds = array<i64: 64, 128>}, {pipeline_mode = #tpu.pipeline_mode<synchronous>, transform_indices = @transform_4, window_bounds = array<i64: 1, 64>}, {pipeline_mode = #tpu.pipeline_mode<synchronous>, transform_indices = @transform_5, window_bounds = array<i64: 64, 64>}, {pipeline_mode = #tpu.pipeline_mode<synchronous>, transform_indices = @transform_6, window_bounds = array<i64: 1, 64>}, {pipeline_mode = #tpu.pipeline_mode<synchronous>, transform_indices = @transform_7, window_bounds = array<i64: 64, 64>}, {pipeline_mode = #tpu.pipeline_mode<synchronous>, transform_indices = @transform_8, window_bounds = array<i64: 1, 64>}, {pipeline_mode = #tpu.pipeline_mode<synchronous>, transform_indices = @transform_9, window_bounds = array<i64: 64, 8>}, {pipeline_mode = #tpu.pipeline_mode<synchronous>, transform_indices = @transform_10, window_bounds = array<i64: 1, 8>}, {transform_indices = @transform_11, window_bounds = array<i64: 8, 8>}]} {
    %c0 = arith.constant 0 : index
    %c0_0 = arith.constant 0 : index
    %0 = vector.load %arg1[%c0, %c0_0] : memref<8x16xf32, #tpu.memory_space<vmem>>, vector<8x16xf32>
    %c0_1 = arith.constant 0 : index
    %c0_2 = arith.constant 0 : index
    %1 = vector.load %arg2[%c0_1, %c0_2] : memref<16x128xf32, #tpu.memory_space<vmem>>, vector<16x128xf32>
    %cst = arith.constant dense<0.000000e+00> : vector<8x128xf32>
    %2 = tpu.matmul %0, %1, %cst {dimension_numbers = #tpu.dot_dimension_numbers<[1], [0], [0], [1], [0, 0, 1, 1], [], []>} : vector<8x16xf32>, vector<16x128xf32>, vector<8x128xf32> -> vector<8x128xf32>
    %3 = vector.extract_strided_slice %2 {offsets = [0, 0], sizes = [8, 64], strides = [1, 1]} : vector<8x128xf32> to vector<8x64xf32>
    %4 = vector.extract_strided_slice %2 {offsets = [0, 64], sizes = [8, 64], strides = [1, 1]} : vector<8x128xf32> to vector<8x64xf32>
    %5 = arith.maximumf %3, %4 : vector<8x64xf32>
    %c0_3 = arith.constant 0 : index
    %c0_4 = arith.constant 0 : index
    %6 = vector.load %arg3[%c0_3, %c0_4] : memref<1x64xf32, #tpu.memory_space<vmem>>, vector<1x64xf32>
    %7 = vector.broadcast %6 : vector<1x64xf32> to vector<8x64xf32>
    %8 = arith.addf %5, %7 : vector<8x64xf32>
    %cst_5 = arith.constant 0.000000e+00 : f32
    %9 = vector.broadcast %cst_5 : f32 to vector<8x64xf32>
    %10 = arith.maximumf %8, %9 : vector<8x64xf32>
    %c0_6 = arith.constant 0 : index
    %c0_7 = arith.constant 0 : index
    %11 = vector.load %arg4[%c0_6, %c0_7] : memref<64x128xf32, #tpu.memory_space<vmem>>, vector<64x128xf32>
    %cst_8 = arith.constant dense<0.000000e+00> : vector<8x128xf32>
    %12 = tpu.matmul %10, %11, %cst_8 {dimension_numbers = #tpu.dot_dimension_numbers<[1], [0], [0], [1], [0, 0, 1, 1], [], []>} : vector<8x64xf32>, vector<64x128xf32>, vector<8x128xf32> -> vector<8x128xf32>
    %13 = vector.extract_strided_slice %12 {offsets = [0, 0], sizes = [8, 64], strides = [1, 1]} : vector<8x128xf32> to vector<8x64xf32>
    %14 = vector.extract_strided_slice %12 {offsets = [0, 64], sizes = [8, 64], strides = [1, 1]} : vector<8x128xf32> to vector<8x64xf32>
    %15 = arith.maximumf %13, %14 : vector<8x64xf32>
    %c0_9 = arith.constant 0 : index
    %c0_10 = arith.constant 0 : index
    %16 = vector.load %arg5[%c0_9, %c0_10] : memref<1x64xf32, #tpu.memory_space<vmem>>, vector<1x64xf32>
    %17 = vector.broadcast %16 : vector<1x64xf32> to vector<8x64xf32>
    %18 = arith.addf %15, %17 : vector<8x64xf32>
    %cst_11 = arith.constant 0.000000e+00 : f32
    %19 = vector.broadcast %cst_11 : f32 to vector<8x64xf32>
    %20 = arith.maximumf %18, %19 : vector<8x64xf32>
    %c0_12 = arith.constant 0 : index
    %c0_13 = arith.constant 0 : index
    %21 = vector.load %arg6[%c0_12, %c0_13] : memref<64x64xf32, #tpu.memory_space<vmem>>, vector<64x64xf32>
    %cst_14 = arith.constant dense<0.000000e+00> : vector<8x64xf32>
    %22 = tpu.matmul %20, %21, %cst_14 {dimension_numbers = #tpu.dot_dimension_numbers<[1], [0], [0], [1], [0, 0, 1, 1], [], []>} : vector<8x64xf32>, vector<64x64xf32>, vector<8x64xf32> -> vector<8x64xf32>
    %c0_15 = arith.constant 0 : index
    %c0_16 = arith.constant 0 : index
    %23 = vector.load %arg7[%c0_15, %c0_16] : memref<1x64xf32, #tpu.memory_space<vmem>>, vector<1x64xf32>
    %24 = vector.broadcast %23 : vector<1x64xf32> to vector<8x64xf32>
    %25 = arith.addf %22, %24 : vector<8x64xf32>
    %cst_17 = arith.constant 0.000000e+00 : f32
    %26 = vector.broadcast %cst_17 : f32 to vector<8x64xf32>
    %27 = arith.maximumf %25, %26 : vector<8x64xf32>
    %c0_18 = arith.constant 0 : index
    %c0_19 = arith.constant 0 : index
    %28 = vector.load %arg8[%c0_18, %c0_19] : memref<64x64xf32, #tpu.memory_space<vmem>>, vector<64x64xf32>
    %cst_20 = arith.constant dense<0.000000e+00> : vector<8x64xf32>
    %29 = tpu.matmul %27, %28, %cst_20 {dimension_numbers = #tpu.dot_dimension_numbers<[1], [0], [0], [1], [0, 0, 1, 1], [], []>} : vector<8x64xf32>, vector<64x64xf32>, vector<8x64xf32> -> vector<8x64xf32>
    %c0_21 = arith.constant 0 : index
    %c0_22 = arith.constant 0 : index
    %30 = vector.load %arg9[%c0_21, %c0_22] : memref<1x64xf32, #tpu.memory_space<vmem>>, vector<1x64xf32>
    %31 = vector.broadcast %30 : vector<1x64xf32> to vector<8x64xf32>
    %32 = arith.addf %29, %31 : vector<8x64xf32>
    %cst_23 = arith.constant 0.000000e+00 : f32
    %33 = vector.broadcast %cst_23 : f32 to vector<8x64xf32>
    %34 = arith.maximumf %32, %33 : vector<8x64xf32>
    %c0_24 = arith.constant 0 : index
    %c0_25 = arith.constant 0 : index
    %35 = vector.load %arg10[%c0_24, %c0_25] : memref<64x8xf32, #tpu.memory_space<vmem>>, vector<64x8xf32>
    %cst_26 = arith.constant dense<0.000000e+00> : vector<8x8xf32>
    %36 = tpu.matmul %34, %35, %cst_26 {dimension_numbers = #tpu.dot_dimension_numbers<[1], [0], [0], [1], [0, 0, 1, 1], [], []>} : vector<8x64xf32>, vector<64x8xf32>, vector<8x8xf32> -> vector<8x8xf32>
    %c0_27 = arith.constant 0 : index
    %c0_28 = arith.constant 0 : index
    %37 = vector.load %arg11[%c0_27, %c0_28] : memref<1x8xf32, #tpu.memory_space<vmem>>, vector<1x8xf32>
    %38 = vector.broadcast %37 : vector<1x8xf32> to vector<8x8xf32>
    %39 = arith.addf %36, %38 : vector<8x8xf32>
    %c0_29 = arith.constant 0 : index
    %c0_30 = arith.constant 0 : index
    %40 = vector.load %arg12[%c0_29, %c0_30] : memref<8x8xf32, #tpu.memory_space<vmem>>, vector<8x8xf32>
    tpu.vector_store %arg12[%c0_29, %c0_30], %39 {strides = array<i32>} : memref<8x8xf32, #tpu.memory_space<vmem>>, vector<8x8xf32>,
    return
  }
  func.func @transform_0(%arg0: i32) -> (i32, i32) {
    %c0_i32 = arith.constant 0 : i32
    %c0_i32_0 = arith.constant 0 : i32
    return %arg0, %c0_i32 : i32, i32
  }
  func.func @transform_1(%arg0: i32) -> (i32, i32) {
    %c0_i32 = arith.constant 0 : i32
    %c0_i32_0 = arith.constant 0 : i32
    %c0_i32_1 = arith.constant 0 : i32
    return %c0_i32, %c0_i32_0 : i32, i32
  }
  func.func @transform_2(%arg0: i32) -> (i32, i32) {
    %c0_i32 = arith.constant 0 : i32
    %c0_i32_0 = arith.constant 0 : i32
    %c0_i32_1 = arith.constant 0 : i32
    return %c0_i32, %c0_i32_0 : i32, i32
  }
  func.func @transform_3(%arg0: i32) -> (i32, i32) {
    %c0_i32 = arith.constant 0 : i32
    %c0_i32_0 = arith.constant 0 : i32
    %c0_i32_1 = arith.constant 0 : i32
    return %c0_i32, %c0_i32_0 : i32, i32
  }
  func.func @transform_4(%arg0: i32) -> (i32, i32) {
    %c0_i32 = arith.constant 0 : i32
    %c0_i32_0 = arith.constant 0 : i32
    %c0_i32_1 = arith.constant 0 : i32
    return %c0_i32, %c0_i32_0 : i32, i32
  }
  func.func @transform_5(%arg0: i32) -> (i32, i32) {
    %c0_i32 = arith.constant 0 : i32
    %c0_i32_0 = arith.constant 0 : i32
    %c0_i32_1 = arith.constant 0 : i32
    return %c0_i32, %c0_i32_0 : i32, i32
  }
  func.func @transform_6(%arg0: i32) -> (i32, i32) {
    %c0_i32 = arith.constant 0 : i32
    %c0_i32_0 = arith.constant 0 : i32
    %c0_i32_1 = arith.constant 0 : i32
    return %c0_i32, %c0_i32_0 : i32, i32
  }
  func.func @transform_7(%arg0: i32) -> (i32, i32) {
    %c0_i32 = arith.constant 0 : i32
    %c0_i32_0 = arith.constant 0 : i32
    %c0_i32_1 = arith.constant 0 : i32
    return %c0_i32, %c0_i32_0 : i32, i32
  }
  func.func @transform_8(%arg0: i32) -> (i32, i32) {
    %c0_i32 = arith.constant 0 : i32
    %c0_i32_0 = arith.constant 0 : i32
    %c0_i32_1 = arith.constant 0 : i32
    return %c0_i32, %c0_i32_0 : i32, i32
  }
  func.func @transform_9(%arg0: i32) -> (i32, i32) {
    %c0_i32 = arith.constant 0 : i32
    %c0_i32_0 = arith.constant 0 : i32
    %c0_i32_1 = arith.constant 0 : i32
    return %c0_i32, %c0_i32_0 : i32, i32
  }
  func.func @transform_10(%arg0: i32) -> (i32, i32) {
    %c0_i32 = arith.constant 0 : i32
    %c0_i32_0 = arith.constant 0 : i32
    %c0_i32_1 = arith.constant 0 : i32
    return %c0_i32, %c0_i32_0 : i32, i32
  }
  func.func @transform_11(%arg0: i32) -> (i32, i32) {
    %c0_i32 = arith.constant 0 : i32
    %c0_i32_0 = arith.constant 0 : i32
    return %arg0, %c0_i32 : i32, i32
  }
}

</mosaic_0001>

<llo_original>
// kernel: _lambda_.1
$region0: #{_lambda_.1}
  #allocation0 [shape = 'u32[]', space=smem, size = 0x4, offset = 0x4, fixed_abs, tag = 'smem constant byte address 0x4 - core index']
  #allocation1 [shape = 'u32[144,128]{1,0:T(1,128)}', space=vmem, size = 0x12000, scoped, tag = 'internal scratch']
  %s0 = inlined_call_operand.vmem [shape: f32[8,16], index: 0, kind: input, shape index: {}]
  %s1 = inlined_call_operand.hbm [shape: f32[16,128], index: 1, kind: input, shape index: {}]
  %s2 = inlined_call_operand.vmem [shape: f32[1,64], index: 2, kind: input, shape index: {}]
  %s3 = inlined_call_operand.hbm [shape: f32[64,128], index: 3, kind: input, shape index: {}]
  %s4 = inlined_call_operand.vmem [shape: f32[1,64], index: 4, kind: input, shape index: {}]
  %s5 = inlined_call_operand.hbm [shape: f32[64,64], index: 5, kind: input, shape index: {}]
  %s6 = inlined_call_operand.vmem [shape: f32[1,64], index: 6, kind: input, shape index: {}]
  %s7 = inlined_call_operand.hbm [shape: f32[64,64], index: 7, kind: input, shape index: {}]
  %s8 = inlined_call_operand.vmem [shape: f32[1,64], index: 8, kind: input, shape index: {}]
  %s9 = inlined_call_operand.hbm [shape: f32[64,8], index: 9, kind: input, shape index: {}]
  %s10 = inlined_call_operand.vmem [shape: f32[1,8], index: 10, kind: input, shape index: {}]
  %s11 = inlined_call_operand.vmem [shape: f32[8,8], index: 11, kind: output, shape index: {}]
  %s12 = sld [smem:[#allocation0]]
  $region74: #{_lambda_.1} parent=0
    _
  %s14 = ssub.s32 1, %s12
  %s15 = scalar_select 0, %s14, %s12
  $region1: #{_lambda_.1} parent=0
    #allocation2 [shape = 'u8[8192]{0}', space=vmem, size = 0x2000, scoped, tag = 'input window, operand 1, single buffered']
    #allocation3 [shape = 's32[1]{0}', space=sflag, size = 0x4, scoped, tag = 'scoped memory for _lambda_.1']
    #allocation4 [shape = 'u8[32768]{0}', space=vmem, size = 0x8000, scoped, tag = 'input window, operand 3, single buffered']
    #allocation5 [shape = 's32[1]{0}', space=sflag, size = 0x4, scoped, tag = 'scoped memory for _lambda_.1']
    #allocation6 [shape = 'u8[32768]{0}', space=vmem, size = 0x8000, scoped, tag = 'input window, operand 5, single buffered']
    #allocation7 [shape = 'u8[32768]{0}', space=vmem, size = 0x8000, scoped, tag = 'input window, operand 7, single buffered']
    #allocation8 [shape = 's32[1]{0}', space=sflag, size = 0x4, scoped, tag = 'scoped memory for _lambda_.1']
    #allocation9 [shape = 'u8[32768]{0}', space=vmem, size = 0x8000, scoped, tag = 'input window, operand 9, single buffered']
    %16 = vsyncpa [#allocation3], 0
    %17 = vsyncpa [#allocation5], 0
    %18 = vsyncpa [#allocation8], 0
    // Predicated region
    $region2: #{_lambda_.1} parent=1 // pred_check
      _
    $region3: #{_lambda_.1} parent=1 // pred_check_branch
      %20 = sbr.rel (0) target = $region5
    $region4: #{_lambda_.1} parent=1 // pred_region
      _
    $region5: #{_lambda_.1} parent=1 // pred_fallthru
      _
    // Predicated region
    $region6: #{_lambda_.1} parent=1 // pred_check
      _
    $region7: #{_lambda_.1} parent=1 // pred_check_branch
      %22 = sbr.rel (0) target = $region9
    $region8: #{_lambda_.1} parent=1 // pred_region
      %s24 = ssub.s32 256, 256
      %25 = vsyncadd [#allocation3], %s24
      %s26 = sshll.u32 [#allocation2], 4
      %s27 = int_to_ptr.vmem [resolvable:$true] %s26
      %32 = dma.hbm_to_vmem [thread:$0]  %s1, 256, %s27, [#allocation3], 128, 128, 8
    $region9: #{_lambda_.1} parent=1 // pred_fallthru
      _
    // Predicated region
    $region10: #{_lambda_.1} parent=1 // pred_check
      _
    $region11: #{_lambda_.1} parent=1 // pred_check_branch
      %34 = sbr.rel (0) target = $region13
    $region12: #{_lambda_.1} parent=1 // pred_region
      _
    $region13: #{_lambda_.1} parent=1 // pred_fallthru
      _
    // Predicated region
    $region14: #{_lambda_.1} parent=1 // pred_check
      _
    $region15: #{_lambda_.1} parent=1 // pred_check_branch
      %36 = sbr.rel (0) target = $region17
    $region16: #{_lambda_.1} parent=1 // pred_region
      %s38 = ssub.s32 1024, 1024
      %39 = vsyncadd [#allocation5], %s38
      %s40 = sshll.u32 [#allocation4], 4
      %s41 = int_to_ptr.vmem [resolvable:$true] %s40
      %46 = dma.hbm_to_vmem [thread:$0]  %s3, 1024, %s41, [#allocation5], 128, 128, 8
    $region17: #{_lambda_.1} parent=1 // pred_fallthru
      _
    // Predicated region
    $region18: #{_lambda_.1} parent=1 // pred_check
      _
    $region19: #{_lambda_.1} parent=1 // pred_check_branch
      %48 = sbr.rel (0) target = $region21
    $region20: #{_lambda_.1} parent=1 // pred_region
      _
    $region21: #{_lambda_.1} parent=1 // pred_fallthru
      _
    // Predicated region
    $region22: #{_lambda_.1} parent=1 // pred_check
      _
    $region23: #{_lambda_.1} parent=1 // pred_check_branch
      %50 = sbr.rel (0) target = $region25
    $region24: #{_lambda_.1} parent=1 // pred_region
      %s52 = ssub.s32 1024, 1024
      %53 = vsyncadd [#allocation5], %s52
      %s54 = sshll.u32 [#allocation6], 4
      %s55 = int_to_ptr.vmem [resolvable:$true] %s54
      %60 = dma.hbm_to_vmem [thread:$0]  %s5, 1024, %s55, [#allocation5], 128, 128, 8
    $region25: #{_lambda_.1} parent=1 // pred_fallthru
      _
    // Predicated region
    $region26: #{_lambda_.1} parent=1 // pred_check
      _
    $region27: #{_lambda_.1} parent=1 // pred_check_branch
      %62 = sbr.rel (0) target = $region29
    $region28: #{_lambda_.1} parent=1 // pred_region
      _
    $region29: #{_lambda_.1} parent=1 // pred_fallthru
      _
    // Predicated region
    $region30: #{_lambda_.1} parent=1 // pred_check
      _
    $region31: #{_lambda_.1} parent=1 // pred_check_branch
      %64 = sbr.rel (0) target = $region33
    $region32: #{_lambda_.1} parent=1 // pred_region
      %s66 = ssub.s32 1024, 1024
      %67 = vsyncadd [#allocation8], %s66
      %s68 = sshll.u32 [#allocation7], 4
      %s69 = int_to_ptr.vmem [resolvable:$true] %s68
      %74 = dma.hbm_to_vmem [thread:$0]  %s7, 1024, %s69, [#allocation8], 128, 128, 8
    $region33: #{_lambda_.1} parent=1 // pred_fallthru
      _
    // Predicated region
    $region34: #{_lambda_.1} parent=1 // pred_check
      _
    $region35: #{_lambda_.1} parent=1 // pred_check_branch
      %76 = sbr.rel (0) target = $region37
    $region36: #{_lambda_.1} parent=1 // pred_region
      _
    $region37: #{_lambda_.1} parent=1 // pred_fallthru
      _
    // Predicated region
    $region38: #{_lambda_.1} parent=1 // pred_check
      _
    $region39: #{_lambda_.1} parent=1 // pred_check_branch
      %78 = sbr.rel (0) target = $region41
    $region40: #{_lambda_.1} parent=1 // pred_region
      %s80 = ssub.s32 1024, 1024
      %81 = vsyncadd [#allocation8], %s80
      %s82 = sshll.u32 [#allocation9], 4
      %s83 = int_to_ptr.vmem [resolvable:$true] %s82
      %88 = dma.hbm_to_vmem [thread:$0]  %s9, 1024, %s83, [#allocation8], 128, 128, 8
    $region41: #{_lambda_.1} parent=1 // pred_fallthru
      _
    // Predicated region
    $region42: #{_lambda_.1} parent=1 // pred_check
      _
    $region43: #{_lambda_.1} parent=1 // pred_check_branch
      %90 = sbr.rel (0) target = $region45
    $region44: #{_lambda_.1} parent=1 // pred_region
      _
    $region45: #{_lambda_.1} parent=1 // pred_fallthru
      _
    // Predicated region
    $region46: #{_lambda_.1} parent=1 // pred_check
      _
    $region47: #{_lambda_.1} parent=1 // pred_check_branch
      %92 = sbr.rel (0) target = $region49
    $region48: #{_lambda_.1} parent=1 // pred_region
      %93 = dma.done [#allocation3], 256
    $region49: #{_lambda_.1} parent=1 // pred_fallthru
      _
    // Predicated region
    $region50: #{_lambda_.1} parent=1 // pred_check
      _
    $region51: #{_lambda_.1} parent=1 // pred_check_branch
      %95 = sbr.rel (0) target = $region53
    $region52: #{_lambda_.1} parent=1 // pred_region
      %96 = dma.done [#allocation5], 1024
    $region53: #{_lambda_.1} parent=1 // pred_fallthru
      _
    // Predicated region
    $region54: #{_lambda_.1} parent=1 // pred_check
      _
    $region55: #{_lambda_.1} parent=1 // pred_check_branch
      %98 = sbr.rel (0) target = $region57
    $region56: #{_lambda_.1} parent=1 // pred_region
      %99 = dma.done [#allocation5], 1024
    $region57: #{_lambda_.1} parent=1 // pred_fallthru
      _
    // Predicated region
    $region58: #{_lambda_.1} parent=1 // pred_check
      _
    $region59: #{_lambda_.1} parent=1 // pred_check_branch
      %101 = sbr.rel (0) target = $region61
    $region60: #{_lambda_.1} parent=1 // pred_region
      %102 = dma.done [#allocation8], 1024
    $region61: #{_lambda_.1} parent=1 // pred_fallthru
      _
    // Predicated region
    $region62: #{_lambda_.1} parent=1 // pred_check
      _
    $region63: #{_lambda_.1} parent=1 // pred_check_branch
      %104 = sbr.rel (0) target = $region65
    $region64: #{_lambda_.1} parent=1 // pred_region
      %105 = dma.done [#allocation8], 1024
    $region65: #{_lambda_.1} parent=1 // pred_fallthru
      _
    %v106 = vld [vmem:[%s0] sm:$0xff]
    %v107 = vld [vmem:[#allocation2] sm:$0xff]
    %v108 = vld [vmem:[#allocation2 + $0x8] sm:$0xff]
    %vm109 = vcmask 130048
    %v111 = vsel %vm109, %v106, 0
    %113 = vmatprep.subr.mxu0 0.0
    %114 = vmatpush1.msra.mxu0 0.0
    %115 = vmatprep.subr.mxu0 0.0
    %116 = vmatpush1.msra.mxu0 0.0
    %117 = vmatprep.subr.mxu0 0.0
    %118 = vmatpush1.msra.mxu0 0.0
    %119 = vmatprep.subr.mxu0 0.0
    %120 = vmatpush1.msra.mxu0 0.0
    %121 = vmatprep.subr.mxu0 0.0
    %122 = vmatpush1.msra.mxu0 0.0
    %123 = vmatprep.subr.mxu0 0.0
    %124 = vmatpush1.msra.mxu0 0.0
    %125 = vmatprep.subr.mxu0 0.0
    %126 = vmatpush1.msra.mxu0 0.0
    %127 = vmatprep.subr.mxu0 0.0
    %128 = vmatpush1.msra.mxu0 0.0
    %129 = vmatprep.subr.mxu0 0.0
    %130 = vmatpush1.msra.mxu0 0.0
    %131 = vmatprep.subr.mxu0 0.0
    %132 = vmatpush1.msra.mxu0 0.0
    %133 = vmatprep.subr.mxu0 0.0
    %134 = vmatpush1.msra.mxu0 0.0
    %135 = vmatprep.subr.mxu0 0.0
    %136 = vmatpush1.msra.mxu0 0.0
    %137 = vmatprep.subr.mxu0 0.0
    %138 = vmatpush1.msra.mxu0 0.0
    %139 = vmatprep.subr.mxu0 0.0
    %140 = vmatpush1.msra.mxu0 0.0
    %141 = vmatprep.subr.mxu0 0.0
    %142 = vmatpush1.msra.mxu0 %v108
    %143 = vmatprep.subr.mxu0 0.0
    %144 = vmatpush1.msra.mxu0 %v107
    %145 = vmatprep.subr.mxu0 0.0
    %146 = vmatpush2.msra.mxu0 0.0
    %147 = vmatprep.subr.mxu0 0.0
    %148 = vmatpush2.msra.mxu0 0.0
    %149 = vmatprep.subr.mxu0 0.0
    %150 = vmatpush2.msra.mxu0 0.0
    %151 = vmatprep.subr.mxu0 0.0
    %152 = vmatpush2.msra.mxu0 0.0
    %153 = vmatprep.subr.mxu0 0.0
    %154 = vmatpush2.msra.mxu0 0.0
    %155 = vmatprep.subr.mxu0 0.0
    %156 = vmatpush2.msra.mxu0 0.0
    %157 = vmatprep.subr.mxu0 0.0
    %158 = vmatpush2.msra.mxu0 0.0
    %159 = vmatprep.subr.mxu0 0.0
    %160 = vmatpush2.msra.mxu0 0.0
    %161 = vmatprep.subr.mxu0 0.0
    %162 = vmatpush2.msra.mxu0 0.0
    %163 = vmatprep.subr.mxu0 0.0
    %164 = vmatpush2.msra.mxu0 0.0
    %165 = vmatprep.subr.mxu0 0.0
    %166 = vmatpush2.msra.mxu0 0.0
    %167 = vmatprep.subr.mxu0 0.0
    %168 = vmatpush2.msra.mxu0 0.0
    %169 = vmatprep.subr.mxu0 0.0
    %170 = vmatpush2.msra.mxu0 0.0
    %171 = vmatprep.subr.mxu0 0.0
    %172 = vmatpush2.msra.mxu0 0.0
    %173 = vmatprep.subr.mxu0 0.0
    %174 = vmatpush2.msra.mxu0 0.0
    %175 = vmatprep.subr.mxu0 0.0
    %176 = vmatpush2.msra.mxu0 0.0
    %177 = vmatprep.mubr.f32.mxu0 0.0
    %178 = vmatmul.mubr.f32.gmra.mxu0 %v111
    %v179 = vpop.f32.mrf.mxu0
    %v180 = vadd.f32 0.0, %v179
    %v181 = vpop.f32.mrf.mxu0
    %182 = vdwg.mxu0
    %184 = vrot.lane.b32.xlu0 %v180, 64
    %v185 = vpop.permute.xlu0 %184
    %v187 = vmax.f32 %v180, %v185
    %v188 = vld [vmem:[%s2] sm:$0x1]
    %v190 = vlaneseq
    %v191 = vshrl.u32 %v190, 7
    %v192 = vsub.s32 0, %v191
    %v193 = vrot.slane %v188, %v192
    %v195 = vadd.f32 %v187, %v193
    %v196 = vmax.f32 %v195, 0.0
    %v197 = vld [vmem:[#allocation4] sm:$0xff]
    %v198 = vld [vmem:[#allocation4 + $0x8] sm:$0xff]
    %v199 = vld [vmem:[#allocation4 + $0x10] sm:$0xff]
    %v200 = vld [vmem:[#allocation4 + $0x18] sm:$0xff]
    %v201 = vld [vmem:[#allocation4 + $0x20] sm:$0xff]
    %v202 = vld [vmem:[#allocation4 + $0x28] sm:$0xff]
    %v203 = vld [vmem:[#allocation4 + $0x30] sm:$0xff]
    %v204 = vld [vmem:[#allocation4 + $0x38] sm:$0xff]
    %vm205 = vcmask 523264
    %v207 = vsel %vm205, %v196, 0
    %209 = vmatprep.subr.mxu0 0.0
    %210 = vmatpush1.msra.mxu0 0.0
    %211 = vmatprep.subr.mxu0 0.0
    %212 = vmatpush1.msra.mxu0 0.0
    %213 = vmatprep.subr.mxu0 0.0
    %214 = vmatpush1.msra.mxu0 0.0
    %215 = vmatprep.subr.mxu0 0.0
    %216 = vmatpush1.msra.mxu0 0.0
    %217 = vmatprep.subr.mxu0 0.0
    %218 = vmatpush1.msra.mxu0 0.0
    %219 = vmatprep.subr.mxu0 0.0
    %220 = vmatpush1.msra.mxu0 0.0
    %221 = vmatprep.subr.mxu0 0.0
    %222 = vmatpush1.msra.mxu0 0.0
    %223 = vmatprep.subr.mxu0 0.0
    %224 = vmatpush1.msra.mxu0 0.0
    %225 = vmatprep.subr.mxu0 0.0
    %226 = vmatpush1.msra.mxu0 %v204
    %227 = vmatprep.subr.mxu0 0.0
    %228 = vmatpush1.msra.mxu0 %v203
    %229 = vmatprep.subr.mxu0 0.0
    %230 = vmatpush1.msra.mxu0 %v202
    %231 = vmatprep.subr.mxu0 0.0
    %232 = vmatpush1.msra.mxu0 %v201
    %233 = vmatprep.subr.mxu0 0.0
    %234 = vmatpush1.msra.mxu0 %v200
    %235 = vmatprep.subr.mxu0 0.0
    %236 = vmatpush1.msra.mxu0 %v199
    %237 = vmatprep.subr.mxu0 0.0
    %238 = vmatpush1.msra.mxu0 %v198
    %239 = vmatprep.subr.mxu0 0.0
    %240 = vmatpush1.msra.mxu0 %v197
    %241 = vmatprep.subr.mxu0 0.0
    %242 = vmatpush2.msra.mxu0 0.0
    %243 = vmatprep.subr.mxu0 0.0
    %244 = vmatpush2.msra.mxu0 0.0
    %245 = vmatprep.subr.mxu0 0.0
    %246 = vmatpush2.msra.mxu0 0.0
    %247 = vmatprep.subr.mxu0 0.0
    %248 = vmatpush2.msra.mxu0 0.0
    %249 = vmatprep.subr.mxu0 0.0
    %250 = vmatpush2.msra.mxu0 0.0
    %251 = vmatprep.subr.mxu0 0.0
    %252 = vmatpush2.msra.mxu0 0.0
    %253 = vmatprep.subr.mxu0 0.0
    %254 = vmatpush2.msra.mxu0 0.0
    %255 = vmatprep.subr.mxu0 0.0
    %256 = vmatpush2.msra.mxu0 0.0
    %257 = vmatprep.subr.mxu0 0.0
    %258 = vmatpush2.msra.mxu0 0.0
    %259 = vmatprep.subr.mxu0 0.0
    %260 = vmatpush2.msra.mxu0 0.0
    %261 = vmatprep.subr.mxu0 0.0
    %262 = vmatpush2.msra.mxu0 0.0
    %263 = vmatprep.subr.mxu0 0.0
    %264 = vmatpush2.msra.mxu0 0.0
    %265 = vmatprep.subr.mxu0 0.0
    %266 = vmatpush2.msra.mxu0 0.0
    %267 = vmatprep.subr.mxu0 0.0
    %268 = vmatpush2.msra.mxu0 0.0
    %269 = vmatprep.subr.mxu0 0.0
    %270 = vmatpush2.msra.mxu0 0.0
    %271 = vmatprep.subr.mxu0 0.0
    %272 = vmatpush2.msra.mxu0 0.0
    %273 = vmatprep.mubr.f32.mxu0 0.0
    %274 = vmatmul.mubr.f32.gmra.mxu0 %v207
    %v275 = vpop.f32.mrf.mxu0
    %v276 = vadd.f32 0.0, %v275
    %v277 = vpop.f32.mrf.mxu0
    %278 = vdwg.mxu0
    %280 = vrot.lane.b32.xlu0 %v276, 64
    %v281 = vpop.permute.xlu0 %280
    %v283 = vmax.f32 %v276, %v281
    %v284 = vld [vmem:[%s4] sm:$0x1]
    %v286 = vlaneseq
    %v287 = vshrl.u32 %v286, 7
    %v288 = vsub.s32 0, %v287
    %v289 = vrot.slane %v284, %v288
    %v291 = vadd.f32 %v283, %v289
    %v292 = vmax.f32 %v291, 0.0
    %v293 = vld [vmem:[#allocation6] sm:$0xff]
    %v294 = vld [vmem:[#allocation6 + $0x8] sm:$0xff]
    %v295 = vld [vmem:[#allocation6 + $0x10] sm:$0xff]
    %v296 = vld [vmem:[#allocation6 + $0x18] sm:$0xff]
    %v297 = vld [vmem:[#allocation6 + $0x20] sm:$0xff]
    %v298 = vld [vmem:[#allocation6 + $0x28] sm:$0xff]
    %v299 = vld [vmem:[#allocation6 + $0x30] sm:$0xff]
    %v300 = vld [vmem:[#allocation6 + $0x38] sm:$0xff]
    %v301 = vld [vmem:[%s6] sm:$0x1]
    %v303 = vlaneseq
    %v304 = vshrl.u32 %v303, 7
    %v305 = vsub.s32 0, %v304
    %v306 = vrot.slane %v301, %v305
    %v309 = vsel %vm205, %v292, 0
    %311 = vmatprep.subr.mxu0 0.0
    %312 = vmatpush1.msra.mxu0 0.0
    %313 = vmatprep.subr.mxu0 0.0
    %314 = vmatpush1.msra.mxu0 0.0
    %315 = vmatprep.subr.mxu0 0.0
    %316 = vmatpush1.msra.mxu0 0.0
    %317 = vmatprep.subr.mxu0 0.0
    %318 = vmatpush1.msra.mxu0 0.0
    %319 = vmatprep.subr.mxu0 0.0
    %320 = vmatpush1.msra.mxu0 0.0
    %321 = vmatprep.subr.mxu0 0.0
    %322 = vmatpush1.msra.mxu0 0.0
    %323 = vmatprep.subr.mxu0 0.0
    %324 = vmatpush1.msra.mxu0 0.0
    %325 = vmatprep.subr.mxu0 0.0
    %326 = vmatpush1.msra.mxu0 0.0
    %327 = vmatprep.subr.mxu0 0.0
    %328 = vmatpush1.msra.mxu0 %v300
    %329 = vmatprep.subr.mxu0 0.0
    %330 = vmatpush1.msra.mxu0 %v299
    %331 = vmatprep.subr.mxu0 0.0
    %332 = vmatpush1.msra.mxu0 %v298
    %333 = vmatprep.subr.mxu0 0.0
    %334 = vmatpush1.msra.mxu0 %v297
    %335 = vmatprep.subr.mxu0 0.0
    %336 = vmatpush1.msra.mxu0 %v296
    %337 = vmatprep.subr.mxu0 0.0
    %338 = vmatpush1.msra.mxu0 %v295
    %339 = vmatprep.subr.mxu0 0.0
    %340 = vmatpush1.msra.mxu0 %v294
    %341 = vmatprep.subr.mxu0 0.0
    %342 = vmatpush1.msra.mxu0 %v293
    %343 = vmatprep.subr.mxu0 0.0
    %344 = vmatpush2.msra.mxu0 0.0
    %345 = vmatprep.subr.mxu0 0.0
    %346 = vmatpush2.msra.mxu0 0.0
    %347 = vmatprep.subr.mxu0 0.0
    %348 = vmatpush2.msra.mxu0 0.0
    %349 = vmatprep.subr.mxu0 0.0
    %350 = vmatpush2.msra.mxu0 0.0
    %351 = vmatprep.subr.mxu0 0.0
    %352 = vmatpush2.msra.mxu0 0.0
    %353 = vmatprep.subr.mxu0 0.0
    %354 = vmatpush2.msra.mxu0 0.0
    %355 = vmatprep.subr.mxu0 0.0
    %356 = vmatpush2.msra.mxu0 0.0
    %357 = vmatprep.subr.mxu0 0.0
    %358 = vmatpush2.msra.mxu0 0.0
    %359 = vmatprep.subr.mxu0 0.0
    %360 = vmatpush2.msra.mxu0 0.0
    %361 = vmatprep.subr.mxu0 0.0
    %362 = vmatpush2.msra.mxu0 0.0
    %363 = vmatprep.subr.mxu0 0.0
    %364 = vmatpush2.msra.mxu0 0.0
    %365 = vmatprep.subr.mxu0 0.0
    %366 = vmatpush2.msra.mxu0 0.0
    %367 = vmatprep.subr.mxu0 0.0
    %368 = vmatpush2.msra.mxu0 0.0
    %369 = vmatprep.subr.mxu0 0.0
    %370 = vmatpush2.msra.mxu0 0.0
    %371 = vmatprep.subr.mxu0 0.0
    %372 = vmatpush2.msra.mxu0 0.0
    %373 = vmatprep.subr.mxu0 0.0
    %374 = vmatpush2.msra.mxu0 0.0
    %375 = vmatprep.mubr.f32.mxu0 0.0
    %376 = vmatmul.mubr.f32.gmra.mxu0 %v309
    %v377 = vpop.f32.mrf.mxu0
    %v378 = vadd.f32 %v306, %v377
    %v379 = vpop.f32.mrf.mxu0
    %380 = vdwg.mxu0
    %v381 = vmax.f32 %v378, 0.0
    %v382 = vld [vmem:[#allocation7] sm:$0xff]
    %v383 = vld [vmem:[#allocation7 + $0x8] sm:$0xff]
    %v384 = vld [vmem:[#allocation7 + $0x10] sm:$0xff]
    %v385 = vld [vmem:[#allocation7 + $0x18] sm:$0xff]
    %v386 = vld [vmem:[#allocation7 + $0x20] sm:$0xff]
    %v387 = vld [vmem:[#allocation7 + $0x28] sm:$0xff]
    %v388 = vld [vmem:[#allocation7 + $0x30] sm:$0xff]
    %v389 = vld [vmem:[#allocation7 + $0x38] sm:$0xff]
    %v390 = vld [vmem:[%s8] sm:$0x1]
    %v392 = vlaneseq
    %v393 = vshrl.u32 %v392, 7
    %v394 = vsub.s32 0, %v393
    %v395 = vrot.slane %v390, %v394
    %v398 = vsel %vm205, %v381, 0
    %400 = vmatprep.subr.mxu0 0.0
    %401 = vmatpush1.msra.mxu0 0.0
    %402 = vmatprep.subr.mxu0 0.0
    %403 = vmatpush1.msra.mxu0 0.0
    %404 = vmatprep.subr.mxu0 0.0
    %405 = vmatpush1.msra.mxu0 0.0
    %406 = vmatprep.subr.mxu0 0.0
    %407 = vmatpush1.msra.mxu0 0.0
    %408 = vmatprep.subr.mxu0 0.0
    %409 = vmatpush1.msra.mxu0 0.0
    %410 = vmatprep.subr.mxu0 0.0
    %411 = vmatpush1.msra.mxu0 0.0
    %412 = vmatprep.subr.mxu0 0.0
    %413 = vmatpush1.msra.mxu0 0.0
    %414 = vmatprep.subr.mxu0 0.0
    %415 = vmatpush1.msra.mxu0 0.0
    %416 = vmatprep.subr.mxu0 0.0
    %417 = vmatpush1.msra.mxu0 %v389
    %418 = vmatprep.subr.mxu0 0.0
    %419 = vmatpush1.msra.mxu0 %v388
    %420 = vmatprep.subr.mxu0 0.0
    %421 = vmatpush1.msra.mxu0 %v387
    %422 = vmatprep.subr.mxu0 0.0
    %423 = vmatpush1.msra.mxu0 %v386
    %424 = vmatprep.subr.mxu0 0.0
    %425 = vmatpush1.msra.mxu0 %v385
    %426 = vmatprep.subr.mxu0 0.0
    %427 = vmatpush1.msra.mxu0 %v384
    %428 = vmatprep.subr.mxu0 0.0
    %429 = vmatpush1.msra.mxu0 %v383
    %430 = vmatprep.subr.mxu0 0.0
    %431 = vmatpush1.msra.mxu0 %v382
    %432 = vmatprep.subr.mxu0 0.0
    %433 = vmatpush2.msra.mxu0 0.0
    %434 = vmatprep.subr.mxu0 0.0
    %435 = vmatpush2.msra.mxu0 0.0
    %436 = vmatprep.subr.mxu0 0.0
    %437 = vmatpush2.msra.mxu0 0.0
    %438 = vmatprep.subr.mxu0 0.0
    %439 = vmatpush2.msra.mxu0 0.0
    %440 = vmatprep.subr.mxu0 0.0
    %441 = vmatpush2.msra.mxu0 0.0
    %442 = vmatprep.subr.mxu0 0.0
    %443 = vmatpush2.msra.mxu0 0.0
    %444 = vmatprep.subr.mxu0 0.0
    %445 = vmatpush2.msra.mxu0 0.0
    %446 = vmatprep.subr.mxu0 0.0
    %447 = vmatpush2.msra.mxu0 0.0
    %448 = vmatprep.subr.mxu0 0.0
    %449 = vmatpush2.msra.mxu0 0.0
    %450 = vmatprep.subr.mxu0 0.0
    %451 = vmatpush2.msra.mxu0 0.0
    %452 = vmatprep.subr.mxu0 0.0
    %453 = vmatpush2.msra.mxu0 0.0
    %454 = vmatprep.subr.mxu0 0.0
    %455 = vmatpush2.msra.mxu0 0.0
    %456 = vmatprep.subr.mxu0 0.0
    %457 = vmatpush2.msra.mxu0 0.0
    %458 = vmatprep.subr.mxu0 0.0
    %459 = vmatpush2.msra.mxu0 0.0
    %460 = vmatprep.subr.mxu0 0.0
    %461 = vmatpush2.msra.mxu0 0.0
    %462 = vmatprep.subr.mxu0 0.0
    %463 = vmatpush2.msra.mxu0 0.0
    %464 = vmatprep.mubr.f32.mxu0 0.0
    %465 = vmatmul.mubr.f32.gmra.mxu0 %v398
    %v466 = vpop.f32.mrf.mxu0
    %v467 = vadd.f32 %v395, %v466
    %v468 = vpop.f32.mrf.mxu0
    %469 = vdwg.mxu0
    %v470 = vmax.f32 %v467, 0.0
    %v471 = vld [vmem:[#allocation9] sm:$0xff]
    %v472 = vld [vmem:[#allocation9 + $0x8] sm:$0xff]
    %v473 = vld [vmem:[#allocation9 + $0x10] sm:$0xff]
    %v474 = vld [vmem:[#allocation9 + $0x18] sm:$0xff]
    %v475 = vld [vmem:[#allocation9 + $0x20] sm:$0xff]
    %v476 = vld [vmem:[#allocation9 + $0x28] sm:$0xff]
    %v477 = vld [vmem:[#allocation9 + $0x30] sm:$0xff]
    %v478 = vld [vmem:[#allocation9 + $0x38] sm:$0xff]
    %v479 = vld [vmem:[%s10] sm:$0x1]
    %v481 = vlaneseq
    %v482 = vshrl.u32 %v481, 7
    %v483 = vsub.s32 0, %v482
    %v484 = vrot.slane %v479, %v483
    %v487 = vsel %vm205, %v470, 0
    %489 = vmatprep.subr.mxu0 0.0
    %490 = vmatpush1.msra.mxu0 0.0
    %491 = vmatprep.subr.mxu0 0.0
    %492 = vmatpush1.msra.mxu0 0.0
    %493 = vmatprep.subr.mxu0 0.0
    %494 = vmatpush1.msra.mxu0 0.0
    %495 = vmatprep.subr.mxu0 0.0
    %496 = vmatpush1.msra.mxu0 0.0
    %497 = vmatprep.subr.mxu0 0.0
    %498 = vmatpush1.msra.mxu0 0.0
    %499 = vmatprep.subr.mxu0 0.0
    %500 = vmatpush1.msra.mxu0 0.0
    %501 = vmatprep.subr.mxu0 0.0
    %502 = vmatpush1.msra.mxu0 0.0
    %503 = vmatprep.subr.mxu0 0.0
    %504 = vmatpush1.msra.mxu0 0.0
    %505 = vmatprep.subr.mxu0 0.0
    %506 = vmatpush1.msra.mxu0 %v478
    %507 = vmatprep.subr.mxu0 0.0
    %508 = vmatpush1.msra.mxu0 %v477
    %509 = vmatprep.subr.mxu0 0.0
    %510 = vmatpush1.msra.mxu0 %v476
    %511 = vmatprep.subr.mxu0 0.0
    %512 = vmatpush1.msra.mxu0 %v475
    %513 = vmatprep.subr.mxu0 0.0
    %514 = vmatpush1.msra.mxu0 %v474
    %515 = vmatprep.subr.mxu0 0.0
    %516 = vmatpush1.msra.mxu0 %v473
    %517 = vmatprep.subr.mxu0 0.0
    %518 = vmatpush1.msra.mxu0 %v472
    %519 = vmatprep.subr.mxu0 0.0
    %520 = vmatpush1.msra.mxu0 %v471
    %521 = vmatprep.subr.mxu0 0.0
    %522 = vmatpush2.msra.mxu0 0.0
    %523 = vmatprep.subr.mxu0 0.0
    %524 = vmatpush2.msra.mxu0 0.0
    %525 = vmatprep.subr.mxu0 0.0
    %526 = vmatpush2.msra.mxu0 0.0
    %527 = vmatprep.subr.mxu0 0.0
    %528 = vmatpush2.msra.mxu0 0.0
    %529 = vmatprep.subr.mxu0 0.0
    %530 = vmatpush2.msra.mxu0 0.0
    %531 = vmatprep.subr.mxu0 0.0
    %532 = vmatpush2.msra.mxu0 0.0
    %533 = vmatprep.subr.mxu0 0.0
    %534 = vmatpush2.msra.mxu0 0.0
    %535 = vmatprep.subr.mxu0 0.0
    %536 = vmatpush2.msra.mxu0 0.0
    %537 = vmatprep.subr.mxu0 0.0
    %538 = vmatpush2.msra.mxu0 0.0
    %539 = vmatprep.subr.mxu0 0.0
    %540 = vmatpush2.msra.mxu0 0.0
    %541 = vmatprep.subr.mxu0 0.0
    %542 = vmatpush2.msra.mxu0 0.0
    %543 = vmatprep.subr.mxu0 0.0
    %544 = vmatpush2.msra.mxu0 0.0
    %545 = vmatprep.subr.mxu0 0.0
    %546 = vmatpush2.msra.mxu0 0.0
    %547 = vmatprep.subr.mxu0 0.0
    %548 = vmatpush2.msra.mxu0 0.0
    %549 = vmatprep.subr.mxu0 0.0
    %550 = vmatpush2.msra.mxu0 0.0
    %551 = vmatprep.subr.mxu0 0.0
    %552 = vmatpush2.msra.mxu0 0.0
    %553 = vmatprep.mubr.f32.mxu0 0.0
    %554 = vmatmul.mubr.f32.gmra.mxu0 %v487
    %v555 = vpop.f32.mrf.mxu0
    %v556 = vadd.f32 %v484, %v555
    %v557 = vpop.f32.mrf.mxu0
    %558 = vdwg.mxu0
    %vm559 = vcmask 64512
    %560 = vst.msk [vmem:[%s11] sm:$0xff] %vm559, %v556
    // Predicated region
    $region66: #{_lambda_.1} parent=1 // pred_check
      _
    $region67: #{_lambda_.1} parent=1 // pred_check_branch
      %562 = sbr.rel (0) target = $region69
    $region68: #{_lambda_.1} parent=1 // pred_region
      _
    $region69: #{_lambda_.1} parent=1 // pred_fallthru
      _
    // Predicated region
    $region70: #{_lambda_.1} parent=1 // pred_check
      _
    $region71: #{_lambda_.1} parent=1 // pred_check_branch
      %564 = sbr.rel (0) target = $region73
    $region72: #{_lambda_.1} parent=1 // pred_region
      _
    $region73: #{_lambda_.1} parent=1 // pred_fallthru
      _
    %565 = vsyncpa [#allocation3], 1
    %566 = vsyncpa [#allocation5], 1
    %567 = vsyncpa [#allocation8], 1

</llo_original>
